<compile_context>
chip_gen: v7x
topology: tpu7x:2x2x1
jax: 0.10.0
libtpu: 0.0.40
codegen_flags: <defaults>
</compile_context>

<pallas_src>
import math
from functools import partial

import jax
import jax.numpy as jnp
from jax.experimental import pallas as pl
from jax.experimental.pallas import tpu as pltpu


def _gaussian_taps_1d(size, std):
    """1D taps reproducing the PyTorch construction (incl. the (2*std) quirk in the
    exponent), normalized to sum to 1.  outer(ky, kx) equals the PyTorch 2D weight
    exactly because the sum-normalization factorizes over the outer product."""
    mean = (size - 1) / 2.0
    g = [
        1.0 / (std * math.sqrt(2.0 * math.pi))
        * math.exp(-(((i - mean) / (2.0 * std)) ** 2))
        for i in range(size)
    ]
    s = sum(g)
    return [v / s for v in g]


def make_gaussian_kernel_2d(kernel_size, sigma, dtype=jnp.float32):
    """Exact PyTorch 2D weight construction (used only by the JAX reference)."""
    if isinstance(kernel_size, (int, float)):
        kernel_size = [int(kernel_size)] * 2
    if isinstance(sigma, (int, float)):
        sigma = [float(sigma)] * 2
    grids = jnp.meshgrid(
        *[jnp.arange(s, dtype=jnp.float32) for s in kernel_size], indexing="ij"
    )
    kernel = jnp.ones((), dtype=jnp.float32)
    for size, std, mgrid in zip(kernel_size, sigma, grids):
        mean = (size - 1) / 2.0
        kernel = kernel * (
            1.0 / (std * math.sqrt(2.0 * math.pi))
            * jnp.exp(-(((mgrid - mean) / (2.0 * std)) ** 2))
        )
    kernel = kernel / jnp.sum(kernel)
    return kernel.astype(dtype)


def _smoothing_kernel(x_ref, o_ref, tmp_ref, *, ky, kx, ho, wo):
    """One grid step = one channel chunk, NCHW-native layout.

    x_ref  : VMEM (TP, H,  W )  input block (H = sublanes, W = lanes)
    o_ref  : VMEM (TP, Ho, Wo)  output block
    tmp_ref: VMEM (TP, H,  Wo)  scratch holding the horizontal-pass result
    ky, kx : Python float taps (compile-time constants)
    """
    kh, kw = len(ky), len(kx)

    # Pass 1: horizontal (W = lane axis).  Load + cast the block once; the kw shifted
    # operands are static lane-offset slices of the loaded value (XLU lane shifts),
    # not kw separate VMEM loads + per-tap casts.  Accumulate in f32.
    xv = x_ref[...].astype(jnp.float32)
    acc = kx[0] * xv[:, :, 0:wo]
    for j in range(1, kw):
        acc = acc + kx[j] * xv[:, :, j:j + wo]
    tmp_ref[...] = acc.astype(tmp_ref.dtype)

    # Pass 2: vertical (H = sublane axis).  f32 register accumulation.
    out = ky[0] * tmp_ref[:, pl.ds(0, ho), :].astype(jnp.float32)
    for i in range(1, kh):
        out = out + ky[i] * tmp_ref[:, pl.ds(i, ho), :].astype(jnp.float32)
    o_ref[...] = out.astype(o_ref.dtype)


def _padded_bytes(shape, itemsize):
    """VMEM-layout byte estimate: last dim padded to 128 lanes, 2nd-to-last to 8 sublanes."""
    *lead, s, l = shape
    n = 1
    for d in lead:
        n *= d
    return n * (-(-s // 8) * 8) * (-(-l // 128) * 128) * itemsize


def _vmem_capacity_bytes():
    try:
        return int(pltpu.get_tpu_info().vmem_capacity_bytes)
    except Exception:
        return 64 << 20  # conservative fallback: v7x per-TensorCore VMEM


def _choose_tile_p(p, h, w, ho, wo, in_isz, tmp_isz, budget):
    """Largest channel chunk whose VMEM plan fits `budget`; keeps >=2 grid steps when a
    >=256-wide chunk also fits (v7x megacore).  Raises if even tile_p=1 does not fit
    (never falls back upward)."""

    def need(tp):
        blocks = (2 * _padded_bytes((tp, h, w), in_isz)      # input, double-buffered
                  + 2 * _padded_bytes((tp, ho, wo), in_isz)  # output, double-buffered
                  + _padded_bytes((tp, h, wo), tmp_isz))     # pass-1 scratch
        temps = (_padded_bytes((tp, h, w), 4)                # casted input value
                 + 2 * _padded_bytes((tp, h, wo), 4))        # pass-1 / pass-2 accumulators
        return blocks + temps

    divisors = [t for t in (2048, 1024, 512, 256, 128, 64, 32, 16, 8, 4, 2, 1)
                if t < p and p % t == 0]
    fitting = [t for t in [p] + divisors if need(t) <= budget]
    if not fitting:
        # TODO(synk): halo-based H tiling would make arbitrarily large planes fit.
        raise ValueError(
            f"GaussianSmoothing: one ({h}, {w}) plane does not fit the VMEM budget "
            f"({budget} bytes) even with a single channel per block; "
            f"H-halo tiling is required for this size.")
    best = fitting[0]
    if best == p:  # prefer >=2 grid steps for v7x's two TensorCores when it is cheap
        multi = [t for t in fitting if t < p and t >= 256]
        if multi:
            best = multi[0]
    return best, need(best)


def gaussian_smoothing(x, kernel_size=3, sigma=1.0):
    """x: (N, C, H, W). Returns (N, C, H-kH+1, W-kW+1), matching
    F.conv2d(x, gaussian_weight, groups=C) (valid / no padding)."""
    n, c, h, w = x.shape
    if isinstance(kernel_size, (int, float)):
        kh = kw = int(kernel_size)
    else:
        kh, kw = (int(k) for k in kernel_size)
    if isinstance(sigma, (int, float)):
        sy = sx = float(sigma)
    else:
        sy, sx = (float(s) for s in sigma)
    assert 1 <= kh <= h and 1 <= kw <= w, "kernel must fit inside the image (valid conv)"
    ho, wo = h - kh + 1, w - kw + 1

    ky = _gaussian_taps_1d(kh, sy)
    kx = _gaussian_taps_1d(kw, sx)

    p = n * c
    # Free relayout: a contiguous NCHW array is already (P, H, W)-contiguous.
    x_p = x.reshape(p, h, w)

    # Keep the horizontal-pass scratch in the I/O dtype for sub-f32 inputs (halves the
    # largest VMEM consumer); register accumulation stays f32.
    tmp_dtype = jnp.float32 if x.dtype == jnp.float32 else x.dtype

    vmem_cap = max(_vmem_capacity_bytes(), 64 << 20)
    # ~96 MiB on 128 MiB parts (v5e/v6e), ~48 MiB on 64 MiB parts (v7x).
    budget = min((vmem_cap * 3) // 4, vmem_cap - (16 << 20))
    tile_p, vmem_need = _choose_tile_p(
        p, h, w, ho, wo, x.dtype.itemsize, jnp.dtype(tmp_dtype).itemsize, budget)
    vmem_limit = int(min(vmem_cap - (4 << 20), max(vmem_need + (8 << 20), 32 << 20)))

    grid = (p // tile_p,)
    out_p = pl.pallas_call(
        partial(_smoothing_kernel, ky=ky, kx=kx, ho=ho, wo=wo),
        out_shape=jax.ShapeDtypeStruct((p, ho, wo), x.dtype),
        grid_spec=pltpu.PrefetchScalarGridSpec(
            num_scalar_prefetch=0,
            grid=grid,
            in_specs=[pl.BlockSpec((tile_p, h, w), lambda i: (i, 0, 0))],
            out_specs=pl.BlockSpec((tile_p, ho, wo), lambda i: (i, 0, 0)),
            scratch_shapes=[pltpu.VMEM((tile_p, h, wo), tmp_dtype)],
        ),
        compiler_params=pltpu.CompilerParams(
            dimension_semantics=("parallel",),
            vmem_limit_bytes=vmem_limit,
        ),
    )(x_p)

    # Free relayout back to NCHW.
    return out_p.reshape(n, c, ho, wo)


def _reference(x, kernel_size=3, sigma=1.0):
    """Plain-JAX reference using depthwise conv (groups=C) with the exact PyTorch
    2D weight construction, for verification."""
    n, c, h, w = x.shape
    w2d = make_gaussian_kernel_2d(kernel_size, sigma)
    wt = jnp.broadcast_to(w2d[None, None], (c, 1) + w2d.shape)
    return jax.lax.conv_general_dilated(
        x, wt, window_strides=(1, 1), padding="VALID",
        dimension_numbers=("NCHW", "OIHW", "NCHW"),
        feature_group_count=c,
    )


if __name__ == "__main__":
    key = jax.random.PRNGKey(0)
    N, C, H, W = 2, 4, 16, 16
    kernel_size, sigma = 3, 1.0
    x = jax.random.normal(key, (N, C, H, W), dtype=jnp.float32)

    out = gaussian_smoothing(x, kernel_size=kernel_size, sigma=sigma)
    out = jax.block_until_ready(out)

    ref = _reference(x, kernel_size=kernel_size, sigma=sigma)
    assert out.shape == (N, C, H - kernel_size + 1, W - kernel_size + 1), out.shape
    err = float(jnp.max(jnp.abs(out - ref)))
    assert jnp.allclose(out, ref, atol=1e-5, rtol=1e-5), err

    # bf16 I/O path (bf16 pass-1 scratch, f32 register accumulation).
    x_bf16 = x.astype(jnp.bfloat16)
    out_bf16 = jax.block_until_ready(
        gaussian_smoothing(x_bf16, kernel_size=kernel_size, sigma=sigma))
    err_bf16 = float(jnp.max(jnp.abs(out_bf16.astype(jnp.float32) - ref)))
    assert err_bf16 < 6e-2, err_bf16

    print("KERNEL_OK")
</pallas_src>

<mosaic_0001>
module attributes {stable_mosaic.version = 11 : i64} {
  func.func @_smoothing_kernel(%arg0: i32, %arg1: memref<8x16x16xf32, #tpu.memory_space<vmem>>, %arg2: memref<8x14x14xf32, #tpu.memory_space<vmem>>, %arg3: memref<8x16x14xf32, #tpu.memory_space<vmem>>) attributes {dimension_semantics = [#tpu.dimension_semantics<parallel>], iteration_bounds = array<i64: 1>, scalar_prefetch = 0 : i64, scratch_operands = 1 : i64, tpu.core_type = #tpu.core_type<tc>, window_params = [{transform_indices = @transform_0, window_bounds = array<i64: 8, 16, 16>}, {transform_indices = @transform_1, window_bounds = array<i64: 8, 14, 14>}]} {
    %c0 = arith.constant 0 : index
    %c0_0 = arith.constant 0 : index
    %c0_1 = arith.constant 0 : index
    %0 = vector.load %arg1[%c0, %c0_0, %c0_1] : memref<8x16x16xf32, #tpu.memory_space<vmem>>, vector<8x16x16xf32>
    %1 = vector.extract_strided_slice %0 {offsets = [0, 0, 0], sizes = [8, 16, 14], strides = [1, 1, 1]} : vector<8x16x16xf32> to vector<8x16x14xf32>
    %cst = arith.constant 0.304504335 : f32
    %2 = vector.broadcast %cst : f32 to vector<8x16x14xf32>
    %3 = arith.mulf %2, %1 : vector<8x16x14xf32>
    %4 = vector.extract_strided_slice %0 {offsets = [0, 0, 1], sizes = [8, 16, 14], strides = [1, 1, 1]} : vector<8x16x16xf32> to vector<8x16x14xf32>
    %cst_2 = arith.constant 0.3909913 : f32
    %5 = vector.broadcast %cst_2 : f32 to vector<8x16x14xf32>
    %6 = arith.mulf %5, %4 : vector<8x16x14xf32>
    %7 = arith.addf %3, %6 : vector<8x16x14xf32>
    %8 = vector.extract_strided_slice %0 {offsets = [0, 0, 2], sizes = [8, 16, 14], strides = [1, 1, 1]} : vector<8x16x16xf32> to vector<8x16x14xf32>
    %cst_3 = arith.constant 0.304504335 : f32
    %9 = vector.broadcast %cst_3 : f32 to vector<8x16x14xf32>
    %10 = arith.mulf %9, %8 : vector<8x16x14xf32>
    %11 = arith.addf %7, %10 : vector<8x16x14xf32>
    %c0_4 = arith.constant 0 : index
    %c0_5 = arith.constant 0 : index
    %c0_6 = arith.constant 0 : index
    %12 = vector.load %arg3[%c0_4, %c0_5, %c0_6] : memref<8x16x14xf32, #tpu.memory_space<vmem>>, vector<8x16x14xf32>
    tpu.vector_store %arg3[%c0_4, %c0_5, %c0_6], %11 {strides = array<i32>} : memref<8x16x14xf32, #tpu.memory_space<vmem>>, vector<8x16x14xf32>,
    %c0_7 = arith.constant 0 : index
    %c0_8 = arith.constant 0 : index
    %c0_9 = arith.constant 0 : index
    %13 = vector.load %arg3[%c0_7, %c0_8, %c0_9] : memref<8x16x14xf32, #tpu.memory_space<vmem>>, vector<8x14x14xf32>
    %cst_10 = arith.constant 0.304504335 : f32
    %14 = vector.broadcast %cst_10 : f32 to vector<8x14x14xf32>
    %15 = arith.mulf %14, %13 : vector<8x14x14xf32>
    %c0_11 = arith.constant 0 : index
    %c1 = arith.constant 1 : index
    %c0_12 = arith.constant 0 : index
    %16 = vector.load %arg3[%c0_11, %c1, %c0_12] : memref<8x16x14xf32, #tpu.memory_space<vmem>>, vector<8x14x14xf32>
    %cst_13 = arith.constant 0.3909913 : f32
    %17 = vector.broadcast %cst_13 : f32 to vector<8x14x14xf32>
    %18 = arith.mulf %17, %16 : vector<8x14x14xf32>
    %19 = arith.addf %15, %18 : vector<8x14x14xf32>
    %c0_14 = arith.constant 0 : index
    %c2 = arith.constant 2 : index
    %c0_15 = arith.constant 0 : index
    %20 = vector.load %arg3[%c0_14, %c2, %c0_15] : memref<8x16x14xf32, #tpu.memory_space<vmem>>, vector<8x14x14xf32>
    %cst_16 = arith.constant 0.304504335 : f32
    %21 = vector.broadcast %cst_16 : f32 to vector<8x14x14xf32>
    %22 = arith.mulf %21, %20 : vector<8x14x14xf32>
    %23 = arith.addf %19, %22 : vector<8x14x14xf32>
    %c0_17 = arith.constant 0 : index
    %c0_18 = arith.constant 0 : index
    %c0_19 = arith.constant 0 : index
    %24 = vector.load %arg2[%c0_17, %c0_18, %c0_19] : memref<8x14x14xf32, #tpu.memory_space<vmem>>, vector<8x14x14xf32>
    tpu.vector_store %arg2[%c0_17, %c0_18, %c0_19], %23 {strides = array<i32>} : memref<8x14x14xf32, #tpu.memory_space<vmem>>, vector<8x14x14xf32>,
    return
  }
  func.func @transform_0(%arg0: i32) -> (i32, i32, i32) {
    %c0_i32 = arith.constant 0 : i32
    %c0_i32_0 = arith.constant 0 : i32
    %c0_i32_1 = arith.constant 0 : i32
    return %arg0, %c0_i32, %c0_i32_0 : i32, i32, i32
  }
  func.func @transform_1(%arg0: i32) -> (i32, i32, i32) {
    %c0_i32 = arith.constant 0 : i32
    %c0_i32_0 = arith.constant 0 : i32
    %c0_i32_1 = arith.constant 0 : i32
    return %arg0, %c0_i32, %c0_i32_0 : i32, i32, i32
  }
}

</mosaic_0001>

<llo_original>
// kernel: tpu_custom_call.1
$region0: #{tpu_custom_call.1}
  #allocation0 [shape = 'u32[]', space=smem, size = 0x4, offset = 0x4, fixed_abs, tag = 'smem constant byte address 0x4 - core index']
  #allocation1 [shape = 'u32[144,128]{1,0:T(1,128)}', space=vmem, size = 0x12000, scoped, tag = 'internal scratch']
  #allocation2 [shape = 'f32[8,16,14]{2,1,0:T(8,128)}', space=vmem, size = 0x10000, scoped, tag = 'scratch operand']
  %s0 = inlined_call_operand.hbm [shape: f32[8,16,16], index: 0, kind: input, shape index: {}]
  %s1 = inlined_call_operand.vmem [shape: f32[8,14,14], index: 1, kind: output, shape index: {}]
  %s2 = sld [smem:[#allocation0]]
  $region18: #{tpu_custom_call.1} parent=0
    _
  %s4 = ssub.s32 1, %s2
  %s5 = scalar_select 0, %s4, %s2
  $region1: #{tpu_custom_call.1} parent=0
    #allocation3 [shape = 'u8[65536]{0}', space=vmem, size = 0x10000, scoped, tag = 'input window, operand 0, single buffered']
    #allocation4 [shape = 's32[1]{0}', space=sflag, size = 0x4, scoped, tag = 'scoped memory for tpu_custom_call.1']
    %6 = vsyncpa [#allocation4], 0
    // Predicated region
    $region2: #{tpu_custom_call.1} parent=1 // pred_check
      _
    $region3: #{tpu_custom_call.1} parent=1 // pred_check_branch
      %8 = sbr.rel (0) target = $region5
    $region4: #{tpu_custom_call.1} parent=1 // pred_region
      %s10 = ssub.s32 2048, 2048
      %11 = vsyncadd [#allocation4], %s10
      %s12 = sshll.u32 [#allocation3], 4
      %s13 = int_to_ptr.vmem [resolvable:$true] %s12
      %18 = dma.hbm_to_vmem [thread:$0]  %s0, 2048, %s13, [#allocation4], 128, 128, 8
    $region5: #{tpu_custom_call.1} parent=1 // pred_fallthru
      _
    // Predicated region
    $region6: #{tpu_custom_call.1} parent=1 // pred_check
      _
    $region7: #{tpu_custom_call.1} parent=1 // pred_check_branch
      %20 = sbr.rel (0) target = $region9
    $region8: #{tpu_custom_call.1} parent=1 // pred_region
      %21 = dma.done [#allocation4], 2048
    $region9: #{tpu_custom_call.1} parent=1 // pred_fallthru
      _
    %v22 = vld [vmem:[#allocation3] sm:$0xff]
    %v23 = vld [vmem:[#allocation3 + $0x8] sm:$0xff]
    %v24 = vld [vmem:[#allocation3 + $0x10] sm:$0xff]
    %v25 = vld [vmem:[#allocation3 + $0x18] sm:$0xff]
    %v26 = vld [vmem:[#allocation3 + $0x20] sm:$0xff]
    %v27 = vld [vmem:[#allocation3 + $0x28] sm:$0xff]
    %v28 = vld [vmem:[#allocation3 + $0x30] sm:$0xff]
    %v29 = vld [vmem:[#allocation3 + $0x38] sm:$0xff]
    %v30 = vld [vmem:[#allocation3 + $0x40] sm:$0xff]
    %v31 = vld [vmem:[#allocation3 + $0x48] sm:$0xff]
    %v32 = vld [vmem:[#allocation3 + $0x50] sm:$0xff]
    %v33 = vld [vmem:[#allocation3 + $0x58] sm:$0xff]
    %v34 = vld [vmem:[#allocation3 + $0x60] sm:$0xff]
    %v35 = vld [vmem:[#allocation3 + $0x68] sm:$0xff]
    %v36 = vld [vmem:[#allocation3 + $0x70] sm:$0xff]
    %v37 = vld [vmem:[#allocation3 + $0x78] sm:$0xff]
    %v38 = vmul.f32 %v22, 0.30450433
    %v39 = vmul.f32 %v23, 0.30450433
    %v40 = vmul.f32 %v24, 0.30450433
    %v41 = vmul.f32 %v25, 0.30450433
    %v42 = vmul.f32 %v26, 0.30450433
    %v43 = vmul.f32 %v27, 0.30450433
    %v44 = vmul.f32 %v28, 0.30450433
    %v45 = vmul.f32 %v29, 0.30450433
    %v46 = vmul.f32 %v30, 0.30450433
    %v47 = vmul.f32 %v31, 0.30450433
    %v48 = vmul.f32 %v32, 0.30450433
    %v49 = vmul.f32 %v33, 0.30450433
    %v50 = vmul.f32 %v34, 0.30450433
    %v51 = vmul.f32 %v35, 0.30450433
    %v52 = vmul.f32 %v36, 0.30450433
    %v53 = vmul.f32 %v37, 0.30450433
    %v54 = vmul.f32 %v22, 0.3909913
    %v55 = vmul.f32 %v23, 0.3909913
    %v56 = vmul.f32 %v24, 0.3909913
    %v57 = vmul.f32 %v25, 0.3909913
    %v58 = vmul.f32 %v26, 0.3909913
    %v59 = vmul.f32 %v27, 0.3909913
    %v60 = vmul.f32 %v28, 0.3909913
    %v61 = vmul.f32 %v29, 0.3909913
    %v62 = vmul.f32 %v30, 0.3909913
    %v63 = vmul.f32 %v31, 0.3909913
    %v64 = vmul.f32 %v32, 0.3909913
    %v65 = vmul.f32 %v33, 0.3909913
    %v66 = vmul.f32 %v34, 0.3909913
    %v67 = vmul.f32 %v35, 0.3909913
    %v68 = vmul.f32 %v36, 0.3909913
    %v69 = vmul.f32 %v37, 0.3909913
    %86 = vrot.lane.b32.xlu0 %v54, 127
    %v87 = vpop.permute.xlu0 %86
    %88 = vrot.lane.b32.xlu0 %v55, 127
    %v89 = vpop.permute.xlu0 %88
    %90 = vrot.lane.b32.xlu0 %v56, 127
    %v91 = vpop.permute.xlu0 %90
    %92 = vrot.lane.b32.xlu0 %v57, 127
    %v93 = vpop.permute.xlu0 %92
    %94 = vrot.lane.b32.xlu0 %v58, 127
    %v95 = vpop.permute.xlu0 %94
    %96 = vrot.lane.b32.xlu0 %v59, 127
    %v97 = vpop.permute.xlu0 %96
    %98 = vrot.lane.b32.xlu0 %v60, 127
    %v99 = vpop.permute.xlu0 %98
    %100 = vrot.lane.b32.xlu0 %v61, 127
    %v101 = vpop.permute.xlu0 %100
    %102 = vrot.lane.b32.xlu0 %v62, 127
    %v103 = vpop.permute.xlu0 %102
    %104 = vrot.lane.b32.xlu0 %v63, 127
    %v105 = vpop.permute.xlu0 %104
    %106 = vrot.lane.b32.xlu0 %v64, 127
    %v107 = vpop.permute.xlu0 %106
    %108 = vrot.lane.b32.xlu0 %v65, 127
    %v109 = vpop.permute.xlu0 %108
    %110 = vrot.lane.b32.xlu0 %v66, 127
    %v111 = vpop.permute.xlu0 %110
    %112 = vrot.lane.b32.xlu0 %v67, 127
    %v113 = vpop.permute.xlu0 %112
    %114 = vrot.lane.b32.xlu0 %v68, 127
    %v115 = vpop.permute.xlu0 %114
    %116 = vrot.lane.b32.xlu0 %v69, 127
    %v117 = vpop.permute.xlu0 %116
    %v134 = vadd.f32 %v38, %v87
    %v135 = vadd.f32 %v39, %v89
    %v136 = vadd.f32 %v40, %v91
    %v137 = vadd.f32 %v41, %v93
    %v138 = vadd.f32 %v42, %v95
    %v139 = vadd.f32 %v43, %v97
    %v140 = vadd.f32 %v44, %v99
    %v141 = vadd.f32 %v45, %v101
    %v142 = vadd.f32 %v46, %v103
    %v143 = vadd.f32 %v47, %v105
    %v144 = vadd.f32 %v48, %v107
    %v145 = vadd.f32 %v49, %v109
    %v146 = vadd.f32 %v50, %v111
    %v147 = vadd.f32 %v51, %v113
    %v148 = vadd.f32 %v52, %v115
    %v149 = vadd.f32 %v53, %v117
    %166 = vrot.lane.b32.xlu0 %v38, 126
    %v167 = vpop.permute.xlu0 %166
    %168 = vrot.lane.b32.xlu0 %v39, 126
    %v169 = vpop.permute.xlu0 %168
    %170 = vrot.lane.b32.xlu0 %v40, 126
    %v171 = vpop.permute.xlu0 %170
    %172 = vrot.lane.b32.xlu0 %v41, 126
    %v173 = vpop.permute.xlu0 %172
    %174 = vrot.lane.b32.xlu0 %v42, 126
    %v175 = vpop.permute.xlu0 %174
    %176 = vrot.lane.b32.xlu0 %v43, 126
    %v177 = vpop.permute.xlu0 %176
    %178 = vrot.lane.b32.xlu0 %v44, 126
    %v179 = vpop.permute.xlu0 %178
    %180 = vrot.lane.b32.xlu0 %v45, 126
    %v181 = vpop.permute.xlu0 %180
    %182 = vrot.lane.b32.xlu0 %v46, 126
    %v183 = vpop.permute.xlu0 %182
    %184 = vrot.lane.b32.xlu0 %v47, 126
    %v185 = vpop.permute.xlu0 %184
    %186 = vrot.lane.b32.xlu0 %v48, 126
    %v187 = vpop.permute.xlu0 %186
    %188 = vrot.lane.b32.xlu0 %v49, 126
    %v189 = vpop.permute.xlu0 %188
    %190 = vrot.lane.b32.xlu0 %v50, 126
    %v191 = vpop.permute.xlu0 %190
    %192 = vrot.lane.b32.xlu0 %v51, 126
    %v193 = vpop.permute.xlu0 %192
    %194 = vrot.lane.b32.xlu0 %v52, 126
    %v195 = vpop.permute.xlu0 %194
    %196 = vrot.lane.b32.xlu0 %v53, 126
    %v197 = vpop.permute.xlu0 %196
    %v214 = vadd.f32 %v134, %v167
    %v215 = vadd.f32 %v135, %v169
    %v216 = vadd.f32 %v136, %v171
    %v217 = vadd.f32 %v137, %v173
    %v218 = vadd.f32 %v138, %v175
    %v219 = vadd.f32 %v139, %v177
    %v220 = vadd.f32 %v140, %v179
    %v221 = vadd.f32 %v141, %v181
    %v222 = vadd.f32 %v142, %v183
    %v223 = vadd.f32 %v143, %v185
    %v224 = vadd.f32 %v144, %v187
    %v225 = vadd.f32 %v145, %v189
    %v226 = vadd.f32 %v146, %v191
    %v227 = vadd.f32 %v147, %v193
    %v228 = vadd.f32 %v148, %v195
    %v229 = vadd.f32 %v149, %v197
    %vm230 = vcmask 113664
    %231 = vst.msk [vmem:[#allocation2] sm:$0xff] %vm230, %v214
    %232 = vst.msk [vmem:[#allocation2 + $0x8] sm:$0xff] %vm230, %v215
    %233 = vst.msk [vmem:[#allocation2 + $0x10] sm:$0xff] %vm230, %v216
    %234 = vst.msk [vmem:[#allocation2 + $0x18] sm:$0xff] %vm230, %v217
    %235 = vst.msk [vmem:[#allocation2 + $0x20] sm:$0xff] %vm230, %v218
    %236 = vst.msk [vmem:[#allocation2 + $0x28] sm:$0xff] %vm230, %v219
    %237 = vst.msk [vmem:[#allocation2 + $0x30] sm:$0xff] %vm230, %v220
    %238 = vst.msk [vmem:[#allocation2 + $0x38] sm:$0xff] %vm230, %v221
    %239 = vst.msk [vmem:[#allocation2 + $0x40] sm:$0xff] %vm230, %v222
    %240 = vst.msk [vmem:[#allocation2 + $0x48] sm:$0xff] %vm230, %v223
    %241 = vst.msk [vmem:[#allocation2 + $0x50] sm:$0xff] %vm230, %v224
    %242 = vst.msk [vmem:[#allocation2 + $0x58] sm:$0xff] %vm230, %v225
    %243 = vst.msk [vmem:[#allocation2 + $0x60] sm:$0xff] %vm230, %v226
    %244 = vst.msk [vmem:[#allocation2 + $0x68] sm:$0xff] %vm230, %v227
    %245 = vst.msk [vmem:[#allocation2 + $0x70] sm:$0xff] %vm230, %v228
    %246 = vst.msk [vmem:[#allocation2 + $0x78] sm:$0xff] %vm230, %v229
    %v247 = vld [vmem:[#allocation2] sm:$0xff]
    %v248 = vld [vmem:[#allocation2 + $0x8] sm:$0x3f]
    %v249 = vld [vmem:[#allocation2 + $0x10] sm:$0xff]
    %v250 = vld [vmem:[#allocation2 + $0x18] sm:$0x3f]
    %v251 = vld [vmem:[#allocation2 + $0x20] sm:$0xff]
    %v252 = vld [vmem:[#allocation2 + $0x28] sm:$0x3f]
    %v253 = vld [vmem:[#allocation2 + $0x30] sm:$0xff]
    %v254 = vld [vmem:[#allocation2 + $0x38] sm:$0x3f]
    %v255 = vld [vmem:[#allocation2 + $0x40] sm:$0xff]
    %v256 = vld [vmem:[#allocation2 + $0x48] sm:$0x3f]
    %v257 = vld [vmem:[#allocation2 + $0x50] sm:$0xff]
    %v258 = vld [vmem:[#allocation2 + $0x58] sm:$0x3f]
    %v259 = vld [vmem:[#allocation2 + $0x60] sm:$0xff]
    %v260 = vld [vmem:[#allocation2 + $0x68] sm:$0x3f]
    %v261 = vld [vmem:[#allocation2 + $0x70] sm:$0xff]
    %v262 = vld [vmem:[#allocation2 + $0x78] sm:$0x3f]
    %v263 = vmul.f32 %v247, 0.30450433
    %v264 = vmul.f32 %v248, 0.30450433
    %v265 = vmul.f32 %v249, 0.30450433
    %v266 = vmul.f32 %v250, 0.30450433
    %v267 = vmul.f32 %v251, 0.30450433
    %v268 = vmul.f32 %v252, 0.30450433
    %v269 = vmul.f32 %v253, 0.30450433
    %v270 = vmul.f32 %v254, 0.30450433
    %v271 = vmul.f32 %v255, 0.30450433
    %v272 = vmul.f32 %v256, 0.30450433
    %v273 = vmul.f32 %v257, 0.30450433
    %v274 = vmul.f32 %v258, 0.30450433
    %v275 = vmul.f32 %v259, 0.30450433
    %v276 = vmul.f32 %v260, 0.30450433
    %v277 = vmul.f32 %v261, 0.30450433
    %v278 = vmul.f32 %v262, 0.30450433
    %v279 = vld [vmem:[#allocation2 + $0x1] sm:$0xff]
    %v280 = vld [vmem:[#allocation2 + $0x9] sm:$0x3f]
    %v281 = vld [vmem:[#allocation2 + $0x11] sm:$0xff]
    %v282 = vld [vmem:[#allocation2 + $0x19] sm:$0x3f]
    %v283 = vld [vmem:[#allocation2 + $0x21] sm:$0xff]
    %v284 = vld [vmem:[#allocation2 + $0x29] sm:$0x3f]
    %v285 = vld [vmem:[#allocation2 + $0x31] sm:$0xff]
    %v286 = vld [vmem:[#allocation2 + $0x39] sm:$0x3f]
    %v287 = vld [vmem:[#allocation2 + $0x41] sm:$0xff]
    %v288 = vld [vmem:[#allocation2 + $0x49] sm:$0x3f]
    %v289 = vld [vmem:[#allocation2 + $0x51] sm:$0xff]
    %v290 = vld [vmem:[#allocation2 + $0x59] sm:$0x3f]
    %v291 = vld [vmem:[#allocation2 + $0x61] sm:$0xff]
    %v292 = vld [vmem:[#allocation2 + $0x69] sm:$0x3f]
    %v293 = vld [vmem:[#allocation2 + $0x71] sm:$0xff]
    %v294 = vld [vmem:[#allocation2 + $0x79] sm:$0x3f]
    %v295 = vmul.f32 %v279, 0.3909913
    %v296 = vmul.f32 %v280, 0.3909913
    %v297 = vmul.f32 %v281, 0.3909913
    %v298 = vmul.f32 %v282, 0.3909913
    %v299 = vmul.f32 %v283, 0.3909913
    %v300 = vmul.f32 %v284, 0.3909913
    %v301 = vmul.f32 %v285, 0.3909913
    %v302 = vmul.f32 %v286, 0.3909913
    %v303 = vmul.f32 %v287, 0.3909913
    %v304 = vmul.f32 %v288, 0.3909913
    %v305 = vmul.f32 %v289, 0.3909913
    %v306 = vmul.f32 %v290, 0.3909913
    %v307 = vmul.f32 %v291, 0.3909913
    %v308 = vmul.f32 %v292, 0.3909913
    %v309 = vmul.f32 %v293, 0.3909913
    %v310 = vmul.f32 %v294, 0.3909913
    %v311 = vadd.f32 %v263, %v295
    %v312 = vadd.f32 %v264, %v296
    %v313 = vadd.f32 %v265, %v297
    %v314 = vadd.f32 %v266, %v298
    %v315 = vadd.f32 %v267, %v299
    %v316 = vadd.f32 %v268, %v300
    %v317 = vadd.f32 %v269, %v301
    %v318 = vadd.f32 %v270, %v302
    %v319 = vadd.f32 %v271, %v303
    %v320 = vadd.f32 %v272, %v304
    %v321 = vadd.f32 %v273, %v305
    %v322 = vadd.f32 %v274, %v306
    %v323 = vadd.f32 %v275, %v307
    %v324 = vadd.f32 %v276, %v308
    %v325 = vadd.f32 %v277, %v309
    %v326 = vadd.f32 %v278, %v310
    %v327 = vld [vmem:[#allocation2 + $0x2] sm:$0xff]
    %v328 = vld [vmem:[#allocation2 + $0xa] sm:$0x3f]
    %v329 = vld [vmem:[#allocation2 + $0x12] sm:$0xff]
    %v330 = vld [vmem:[#allocation2 + $0x1a] sm:$0x3f]
    %v331 = vld [vmem:[#allocation2 + $0x22] sm:$0xff]
    %v332 = vld [vmem:[#allocation2 + $0x2a] sm:$0x3f]
    %v333 = vld [vmem:[#allocation2 + $0x32] sm:$0xff]
    %v334 = vld [vmem:[#allocation2 + $0x3a] sm:$0x3f]
    %v335 = vld [vmem:[#allocation2 + $0x42] sm:$0xff]
    %v336 = vld [vmem:[#allocation2 + $0x4a] sm:$0x3f]
    %v337 = vld [vmem:[#allocation2 + $0x52] sm:$0xff]
    %v338 = vld [vmem:[#allocation2 + $0x5a] sm:$0x3f]
    %v339 = vld [vmem:[#allocation2 + $0x62] sm:$0xff]
    %v340 = vld [vmem:[#allocation2 + $0x6a] sm:$0x3f]
    %v341 = vld [vmem:[#allocation2 + $0x72] sm:$0xff]
    %v342 = vld [vmem:[#allocation2 + $0x7a] sm:$0x3f]
    %v343 = vmul.f32 %v327, 0.30450433
    %v344 = vmul.f32 %v328, 0.30450433
    %v345 = vmul.f32 %v329, 0.30450433
    %v346 = vmul.f32 %v330, 0.30450433
    %v347 = vmul.f32 %v331, 0.30450433
    %v348 = vmul.f32 %v332, 0.30450433
    %v349 = vmul.f32 %v333, 0.30450433
    %v350 = vmul.f32 %v334, 0.30450433
    %v351 = vmul.f32 %v335, 0.30450433
    %v352 = vmul.f32 %v336, 0.30450433
    %v353 = vmul.f32 %v337, 0.30450433
    %v354 = vmul.f32 %v338, 0.30450433
    %v355 = vmul.f32 %v339, 0.30450433
    %v356 = vmul.f32 %v340, 0.30450433
    %v357 = vmul.f32 %v341, 0.30450433
    %v358 = vmul.f32 %v342, 0.30450433
    %v359 = vadd.f32 %v311, %v343
    %v360 = vadd.f32 %v312, %v344
    %v361 = vadd.f32 %v313, %v345
    %v362 = vadd.f32 %v314, %v346
    %v363 = vadd.f32 %v315, %v347
    %v364 = vadd.f32 %v316, %v348
    %v365 = vadd.f32 %v317, %v349
    %v366 = vadd.f32 %v318, %v350
    %v367 = vadd.f32 %v319, %v351
    %v368 = vadd.f32 %v320, %v352
    %v369 = vadd.f32 %v321, %v353
    %v370 = vadd.f32 %v322, %v354
    %v371 = vadd.f32 %v323, %v355
    %v372 = vadd.f32 %v324, %v356
    %v373 = vadd.f32 %v325, %v357
    %v374 = vadd.f32 %v326, %v358
    %375 = vst.msk [vmem:[%s1] sm:$0xff] %vm230, %v359
    %vm376 = vcmask 111616
    %377 = vst.msk [vmem:[%s1 + $0x8] sm:$0x3f] %vm376, %v360
    %378 = vst.msk [vmem:[%s1 + $0x10] sm:$0xff] %vm230, %v361
    %379 = vst.msk [vmem:[%s1 + $0x18] sm:$0x3f] %vm376, %v362
    %380 = vst.msk [vmem:[%s1 + $0x20] sm:$0xff] %vm230, %v363
    %381 = vst.msk [vmem:[%s1 + $0x28] sm:$0x3f] %vm376, %v364
    %382 = vst.msk [vmem:[%s1 + $0x30] sm:$0xff] %vm230, %v365
    %383 = vst.msk [vmem:[%s1 + $0x38] sm:$0x3f] %vm376, %v366
    %384 = vst.msk [vmem:[%s1 + $0x40] sm:$0xff] %vm230, %v367
    %385 = vst.msk [vmem:[%s1 + $0x48] sm:$0x3f] %vm376, %v368
    %386 = vst.msk [vmem:[%s1 + $0x50] sm:$0xff] %vm230, %v369
    %387 = vst.msk [vmem:[%s1 + $0x58] sm:$0x3f] %vm376, %v370
    %388 = vst.msk [vmem:[%s1 + $0x60] sm:$0xff] %vm230, %v371
    %389 = vst.msk [vmem:[%s1 + $0x68] sm:$0x3f] %vm376, %v372
    %390 = vst.msk [vmem:[%s1 + $0x70] sm:$0xff] %vm230, %v373
    %391 = vst.msk [vmem:[%s1 + $0x78] sm:$0x3f] %vm376, %v374
    // Predicated region
    $region10: #{tpu_custom_call.1} parent=1 // pred_check
      _
    $region11: #{tpu_custom_call.1} parent=1 // pred_check_branch
      %393 = sbr.rel (0) target = $region13
    $region12: #{tpu_custom_call.1} parent=1 // pred_region
      _
    $region13: #{tpu_custom_call.1} parent=1 // pred_fallthru
      _
    // Predicated region
    $region14: #{tpu_custom_call.1} parent=1 // pred_check
      _
    $region15: #{tpu_custom_call.1} parent=1 // pred_check_branch
      %395 = sbr.rel (0) target = $region17
    $region16: #{tpu_custom_call.1} parent=1 // pred_region
      _
    $region17: #{tpu_custom_call.1} parent=1 // pred_fallthru
      _
    %396 = vsyncpa [#allocation4], 1

</llo_original>
